<compile_context>
chip_gen: v6e
topology: v6e:2x2x1
jax: 0.10.0
libtpu: 0.0.40
codegen_flags: <defaults>
</compile_context>

<pallas_src>
import jax
import jax.numpy as jnp
from jax.experimental import pallas as pl
from jax.experimental.pallas import tpu as pltpu


# -----------------------------------------------------------------------------
# Packed-weight layout (all offsets 8-sublane aligned, 128 lanes wide)
# -----------------------------------------------------------------------------
K_PAD = 16                      # feature lanes: S+2 features + 1 bias lane, padded
R_PAD = 128                     # relation lanes (R=16 used)
OUT_PAD = 128                   # output lanes (S=6 used) -> lane-dense store
W_OUT_ROW0 = K_PAD              # rows [0, 16)   : w_in (rows) + w_b (row S+2)
PACK_ROWS = K_PAD + R_PAD       # rows [16, 144) : w_out.T (R rows used, rest zero)


def _round_up(x, m):
    return ((x + m - 1) // m) * m


# -----------------------------------------------------------------------------
# Pallas kernel: du = exp(x_aug @ w_in_aug) @ w_out.T for a batch tile of rows
# -----------------------------------------------------------------------------
def crnn_forward_kernel(x_ref, w_ref, du_ref):
    # x_ref : (B_tile, K_PAD)    features [logx | R/T | hyp_T*logT | 1 | 0...]
    # w_ref : (PACK_ROWS, R_PAD) packed weights, grid-invariant (resident)
    # du_ref: (B_tile, OUT_PAD)  output, first S lanes valid, padded lanes zero
    x = x_ref[...]
    w_in_aug = w_ref[0:K_PAD, :]                # (K_PAD, R_PAD); row S+2 is w_b
    w_out_t = w_ref[W_OUT_ROW0:PACK_ROWS, :]    # (R_PAD, OUT_PAD)

    # Padded relation lanes: the w_in_aug column is zero -> exp(0)=1, but the
    # matching w_out_t row is zero, so they contribute nothing to du.
    # TODO(synk): exp() can overflow f32 for large activations where PyTorch's
    # f64 would not.
    z = jnp.exp(jnp.dot(x, w_in_aug, preferred_element_type=jnp.float32))
    du_ref[...] = jnp.dot(z, w_out_t, preferred_element_type=jnp.float32)


def crnn_pallas_batched(x_pad, w_packed, *, b_tile):
    """x_pad: (B_pad, K_PAD) f32, w_packed: (144, 128) f32 -> (B_pad, 128) f32."""
    b_pad = x_pad.shape[0]
    assert b_pad % b_tile == 0
    grid = (b_pad // b_tile,)
    return pl.pallas_call(
        crnn_forward_kernel,
        out_shape=jax.ShapeDtypeStruct((b_pad, OUT_PAD), jnp.float32),
        grid=grid,
        in_specs=[
            pl.BlockSpec((b_tile, K_PAD), lambda i: (i, 0)),
            # Constant index_map: single grid-invariant weight DMA (resident).
            pl.BlockSpec((PACK_ROWS, R_PAD), lambda i: (0, 0)),
        ],
        out_specs=pl.BlockSpec((b_tile, OUT_PAD), lambda i: (i, 0)),
        compiler_params=pltpu.CompilerParams(
            dimension_semantics=("parallel",)),  # v7x: shard B-tiles over 2 TCs
    )(x_pad, w_packed)


# -----------------------------------------------------------------------------
# Plain-JAX glue reproducing the PyTorch module's parameter setup / init_state
# -----------------------------------------------------------------------------
def _interp_extrap(tq, t_grid, y_grid):
    """Linear interp with linear extrapolation (scipy slinear + extrapolate)."""
    idx = jnp.clip(jnp.searchsorted(t_grid, tq) - 1, 0, t_grid.shape[0] - 2)
    t0, t1 = t_grid[idx], t_grid[idx + 1]
    y0, y1 = y_grid[idx], y_grid[idx + 1]
    return y0 + (y1 - y0) * (tq - t0) / (t1 - t0)


class CRNNPallas:
    def __init__(self, relation_nums, source_nums, p_cutoff, lb, key):
        assert source_nums + 3 <= K_PAD
        assert relation_nums <= R_PAD and source_nums <= OUT_PAD
        self.relation_nums = relation_nums
        self.source_nums = source_nums
        self.p_cutoff = p_cutoff
        self.lb = lb
        self.Rconst = -1.0 / 0.008314

        k1, k2, k3, k4 = jax.random.split(key, 4)
        rn, sn = relation_nums, source_nums
        data_p = jax.random.normal(k1, ((sn + 4) * rn + 1,), dtype=jnp.float32) * 0.01
        data_p = data_p.at[-1].set(0.15)
        data_p = data_p.at[0:rn].add(0.8)
        data_p = data_p.at[rn * (sn + 1):rn * (sn + 2)].add(0.8)
        data_p = data_p.at[rn * (sn + 2):rn * (sn + 3)].add(0.1)
        data_p = data_p.at[rn * (sn + 3):rn * (sn + 4)].add(0.1)
        self.data_p = data_p

        self.hyp_ocen = jax.random.uniform(k2, (1,), dtype=jnp.float32)
        self.hyp_T = jnp.float32(4.0)

        # molecule_linear exists in __init__ but is never used in forward();
        # initialize deterministically for parity anyway.
        self.ml_w1 = jax.random.normal(k3, (3, sn), dtype=jnp.float32) * 0.1
        self.ml_b1 = jnp.zeros((3,), jnp.float32)
        self.ml_w2 = jax.random.normal(k4, (1, 3), dtype=jnp.float32) * 0.1
        self.ml_b2 = jnp.zeros((1,), jnp.float32)

    # ---- init_* helpers (mirror PyTorch) ----
    def _init_w_b(self, w_b):
        return jnp.clip(w_b * self.slope * 10.0, 0.0, 50.0)

    def _init_w_in_Ea(self, w):
        return jnp.clip(jnp.abs(w) * (self.slope * 100.0), 0.0, 300.0)

    def _init_w_in_b(self, w):
        return jnp.abs(w)

    def _init_w_in_ocen(self, w):
        w = jnp.clip(jnp.abs(w), 0.0, 1.5)
        if self.p_cutoff > 0.0:
            w = jnp.where(jnp.abs(w) < self.p_cutoff, 0.0, w)
        return w

    def _init_w_out(self, w_out):
        sn = self.source_nums
        w0 = jnp.clip(w_out[0, :], -3.0, 0.0)[None, :]
        wl = jnp.clip(jnp.abs(w_out[-1, :]), 0.0, 3.0)[None, :]
        w_upd = jnp.concatenate([w0, w_out[1:-1, :], wl], axis=0)
        if self.p_cutoff > 0.0:
            w_upd = jnp.where(jnp.abs(w_upd) < self.p_cutoff, 0.0, w_upd)
        w_slast = -jnp.sum(w_upd[0:sn - 2, :], axis=0) - w_upd[sn - 1, :]
        return jnp.concatenate(
            [w_upd[0:sn - 2, :], w_slast[None, :], w_upd[sn - 1, :][None, :]], axis=0)

    def init_state(self, ini_state, t, temp):
        self.T0, self.beta, self.ocen = ini_state[0], ini_state[1], ini_state[2]
        self.slope = self.data_p[-1] * 10.0
        rn, sn = self.relation_nums, self.source_nums
        self.w_b = self._init_w_b(self.data_p[0:rn]).astype(jnp.float32)
        self.w_in_Ea = self._init_w_in_Ea(self.data_p[rn * (sn + 1):rn * (sn + 2)])
        self.w_in_b = self._init_w_in_b(self.data_p[rn * (sn + 2):rn * (sn + 3)])
        self.w_in_ocen = self._init_w_in_ocen(self.data_p[rn * (sn + 3):rn * (sn + 4)])
        w_out = self.data_p[rn:rn * (sn + 1)].reshape(rn, sn).swapaxes(0, 1)  # (S, R)
        self.w_out = self._init_w_out(w_out).astype(jnp.float32)
        self.t_grid = t
        self.temp_grid = temp
        self.min_t, self.max_t = t.min(), t.max()

        # ---- precompute & pack weights once (invariant across forward calls)
        self.w_in_full = jnp.concatenate(
            [jnp.clip(-self.w_out, 0.0, 4.0),
             self.w_in_Ea[None, :], self.w_in_b[None, :]],
            axis=0).astype(jnp.float32)                     # (S+2, R)
        k, r = self.w_in_full.shape
        wp = jnp.zeros((PACK_ROWS, R_PAD), jnp.float32)
        wp = wp.at[0:k, 0:r].set(self.w_in_full)            # w_in rows
        wp = wp.at[k, 0:r].set(self.w_b)                    # bias row (lane S+2 = 1)
        wp = wp.at[W_OUT_ROW0:W_OUT_ROW0 + r, 0:sn].set(self.w_out.T)
        self.w_packed = wp

    # ---- forward ----
    def _build_features(self, t, x):
        """(B,) times + (B, S) states -> (B, S+2) kernel input features."""
        x = jnp.clip(x, self.lb, 10.0)
        logx = jnp.log(x).reshape(-1, self.source_nums)
        T = _interp_extrap(jnp.asarray(t).reshape(-1), self.t_grid, self.temp_grid)
        return jnp.concatenate(
            [logx, (self.Rconst / T)[:, None], (self.hyp_T * jnp.log(T))[:, None]],
            axis=1).astype(jnp.float32)

    def forward_batch(self, t_batch, x_batch):
        """Evaluate many (t, x) pairs in one pallas_call. Returns (B, S)."""
        feats = self._build_features(t_batch, x_batch)      # (B, S+2)
        b, k = feats.shape
        b_tile = min(128, _round_up(b, 8))
        b_pad = _round_up(b, b_tile)
        x_pad = jnp.zeros((b_pad, K_PAD), jnp.float32)
        x_pad = x_pad.at[:b, :k].set(feats)
        x_pad = x_pad.at[:b, k].set(1.0)                    # constant bias lane
        du_pad = crnn_pallas_batched(x_pad, self.w_packed, b_tile=b_tile)
        return du_pad[:b, :self.source_nums]

    def forward(self, t, x):
        """Single-evaluation path matching the PyTorch module: returns (1, S)."""
        return self.forward_batch(jnp.asarray(t).reshape(-1),
                                  x.reshape(1, self.source_nums))


if __name__ == "__main__":
    key = jax.random.PRNGKey(0)
    relation_nums, source_nums = 16, 6
    model = CRNNPallas(relation_nums, source_nums, p_cutoff=0.05, lb=1e-6, key=key)

    # init_state inputs (deterministic)
    ini_state = jnp.array([500.0, 10.0, 0.21], jnp.float32)   # [T0, beta, ocen]
    t_grid = jnp.linspace(0.0, 10.0, 8).astype(jnp.float32)
    temp_grid = 300.0 + 20.0 * t_grid
    model.init_state(ini_state, t_grid, temp_grid)

    # ---- batched path: many solver evaluations per pallas_call ----
    B = 256
    kx, kt = jax.random.split(jax.random.PRNGKey(1))
    x_batch = jnp.abs(jax.random.normal(kx, (B, source_nums), dtype=jnp.float32)) + 0.1
    t_batch = jax.random.uniform(kt, (B,), jnp.float32, 0.0, 10.0)

    du_batch = jax.block_until_ready(model.forward_batch(t_batch, x_batch))
    assert du_batch.shape == (B, source_nums)

    feats = model._build_features(t_batch, x_batch)
    ref_batch = jnp.exp(feats @ model.w_in_full + model.w_b[None, :]) @ model.w_out.T
    assert jnp.allclose(du_batch, ref_batch, rtol=2e-2, atol=2e-2), (du_batch, ref_batch)

    # ---- single-row forward, same semantics as the PyTorch module ----
    x1 = x_batch[:1]
    t1 = jnp.array([2.5], jnp.float32)
    du1 = jax.block_until_ready(model.forward(t1, x1))
    assert du1.shape == (1, source_nums)

    feats1 = model._build_features(t1, x1)
    ref1 = jnp.exp(feats1 @ model.w_in_full + model.w_b[None, :]) @ model.w_out.T
    assert jnp.allclose(du1, ref1, rtol=2e-2, atol=2e-2), (du1, ref1)

    print("KERNEL_OK")
</pallas_src>

<mosaic_0001>
module attributes {stable_mosaic.version = 11 : i64} {
  func.func @crnn_forward_kernel(%arg0: i32, %arg1: memref<128x16xf32, #tpu.memory_space<vmem>>, %arg2: memref<144x128xf32, #tpu.memory_space<vmem>>, %arg3: memref<128x128xf32, #tpu.memory_space<vmem>>) attributes {dimension_semantics = [#tpu.dimension_semantics<parallel>], iteration_bounds = array<i64: 2>, scalar_prefetch = 0 : i64, scratch_operands = 0 : i64, tpu.core_type = #tpu.core_type<tc>, window_params = [{transform_indices = @transform_0, window_bounds = array<i64: 128, 16>}, {pipeline_mode = #tpu.pipeline_mode<synchronous>, transform_indices = @transform_1, window_bounds = array<i64: 144, 128>}, {transform_indices = @transform_2, window_bounds = array<i64: 128, 128>}]} {
    %c0 = arith.constant 0 : index
    %c0_0 = arith.constant 0 : index
    %0 = vector.load %arg1[%c0, %c0_0] : memref<128x16xf32, #tpu.memory_space<vmem>>, vector<128x16xf32>
    %c0_1 = arith.constant 0 : index
    %c0_2 = arith.constant 0 : index
    %1 = vector.load %arg2[%c0_1, %c0_2] : memref<144x128xf32, #tpu.memory_space<vmem>>, vector<16x128xf32>
    %c16 = arith.constant 16 : index
    %c0_3 = arith.constant 0 : index
    %2 = vector.load %arg2[%c16, %c0_3] : memref<144x128xf32, #tpu.memory_space<vmem>>, vector<128x128xf32>
    %cst = arith.constant dense<0.000000e+00> : vector<128x128xf32>
    %3 = tpu.matmul %0, %1, %cst {dimension_numbers = #tpu.dot_dimension_numbers<[1], [0], [0], [1], [0, 0, 1, 1], [], []>} : vector<128x16xf32>, vector<16x128xf32>, vector<128x128xf32> -> vector<128x128xf32>
    %4 = math.exp %3 : vector<128x128xf32>
    %cst_4 = arith.constant dense<0.000000e+00> : vector<128x128xf32>
    %5 = tpu.matmul %4, %2, %cst_4 {dimension_numbers = #tpu.dot_dimension_numbers<[1], [0], [0], [1], [0, 0, 1, 1], [], []>} : vector<128x128xf32>, vector<128x128xf32>, vector<128x128xf32> -> vector<128x128xf32>
    %c0_5 = arith.constant 0 : index
    %c0_6 = arith.constant 0 : index
    %6 = vector.load %arg3[%c0_5, %c0_6] : memref<128x128xf32, #tpu.memory_space<vmem>>, vector<128x128xf32>
    tpu.vector_store %arg3[%c0_5, %c0_6], %5 {strides = array<i32>} : memref<128x128xf32, #tpu.memory_space<vmem>>, vector<128x128xf32>,
    return
  }
  func.func @transform_0(%arg0: i32) -> (i32, i32) {
    %c0_i32 = arith.constant 0 : i32
    %c0_i32_0 = arith.constant 0 : i32
    return %arg0, %c0_i32 : i32, i32
  }
  func.func @transform_1(%arg0: i32) -> (i32, i32) {
    %c0_i32 = arith.constant 0 : i32
    %c0_i32_0 = arith.constant 0 : i32
    %c0_i32_1 = arith.constant 0 : i32
    return %c0_i32, %c0_i32_0 : i32, i32
  }
  func.func @transform_2(%arg0: i32) -> (i32, i32) {
    %c0_i32 = arith.constant 0 : i32
    %c0_i32_0 = arith.constant 0 : i32
    return %arg0, %c0_i32 : i32, i32
  }
}

</mosaic_0001>

<llo_original>
// kernel: tpu_custom_call.1
$region0: #{tpu_custom_call.1}
  #allocation0 [shape = 'u32[]', space=smem, size = 0x4, offset = 0x4, fixed_abs, tag = 'smem constant byte address 0x4 - core index']
  #allocation1 [shape = 'u32[144,128]{1,0:T(1,128)}', space=vmem, size = 0x12000, scoped, tag = 'internal scratch']
  %s0 = inlined_call_operand.vmem [shape: f32[256,16], index: 0, kind: input, shape index: {}]
  %s1 = inlined_call_operand.vmem [shape: f32[144,128], index: 1, kind: input, shape index: {}]
  %s2 = inlined_call_operand.hbm [shape: f32[256,128], index: 2, kind: output, shape index: {}]
  %s3 = sld [smem:[#allocation0]]
  $region41: #{tpu_custom_call.1} parent=0
    _
  %s5 = ssub.s32 1, %s3
  %s6 = scalar_select 0, %s5, %s3
  $region1: #{tpu_custom_call.1} parent=0
    #allocation2 [shape = 'u8[131072]{0}', space=vmem, size = 0x20000, scoped, tag = 'output window, operand 0']
    #allocation3 [shape = 's32[2]{0}', space=sflag, size = 0x8, scoped, tag = 'scoped memory for tpu_custom_call.1']
    %7 = vsyncpa [#allocation3], 0
    %s8 = scalar_lea.sflag [#allocation3], 1
    %9 = vsyncpa %s8, 0
    loop: start=0, step=1, limit=4
    $region2: #{tpu_custom_call.1} parent=1 // loop_pre_header
      _
    $region3: #{tpu_custom_call.1} parent=1 // loop_header
      %s11 = sphi 0, %s15
      %p12 = scmp.ge.s32.totalorder %s11, 4
      %s21 = sphi 0, %s23
      %s24 = sphi 0, %s21
      %s25 = sphi 0, %s24
      %s41 = sphi 0, %s25
      %s45 = sphi 0, %s45
      %s47 = sphi 0, %s45
      %s48 = sphi 0, %s47
      %s62 = sphi 0, %s48
      %s68 = sphi 0, %s70
      %s71 = sphi 0, %s68
      %s72 = sphi 0, %s71
      %s88 = sphi 0, %s72
    $region4: #{tpu_custom_call.1} parent=1 // loop_header_branch
      %14 = sbr.rel (%p12) target = $region8
    $region5: #{tpu_custom_call.1} parent=1 // loop_body
      %s16 = ssub.s32 %s11, 1
      %s17 = ssub.s32 %s11, 2
      %s18 = sadd.s32 %s11, 1
      %s19 = ssub.s32 %s11, %s18
      %p20 = scmp.eq.s32.totalorder %s19, 0
      %s22 = sadd.s32 %s21, 1
      %s23 = scalar_select %p20, %s21, %s22
      %p26 = pneg %p20
      %p27 = scmp.eq.s32.totalorder %s11, 1
      %p28 = por %p26, %p27
      %p29 = scmp.ne.s32.totalorder %s21, %s24
      %p30 = scmp.eq.s32.totalorder %s11, 0
      %p31 = por %p29, %p30
      %p32 = scmp.ne.s32.totalorder %s21, %s24
      %p33 = scmp.eq.s32.totalorder %s16, 1
      %p34 = por %p32, %p33
      %p35 = scmp.ne.s32.totalorder %s24, %s25
      %p36 = scmp.eq.s32.totalorder %s16, 0
      %p37 = por %p35, %p36
      %p38 = scmp.ne.s32.totalorder %s24, %s25
      %p39 = scmp.eq.s32.totalorder %s17, 1
      %p40 = por %p38, %p39
      %p42 = scmp.ne.s32.totalorder %s25, %s41
      %p43 = scmp.eq.s32.totalorder %s17, 0
      %p44 = por %p42, %p43
      %s46 = sadd.s32 %s45, 1
      %p49 = scmp.eq.s32.totalorder %s11, 1
      %p50 = scmp.ne.s32.totalorder %s45, %s47
      %p51 = scmp.eq.s32.totalorder %s11, 0
      %p52 = por %p50, %p51
      %p53 = scmp.ne.s32.totalorder %s45, %s47
      %p54 = scmp.eq.s32.totalorder %s16, 1
      %p55 = por %p53, %p54
      %p56 = scmp.ne.s32.totalorder %s47, %s48
      %p57 = scmp.eq.s32.totalorder %s16, 0
      %p58 = por %p56, %p57
      %p59 = scmp.ne.s32.totalorder %s47, %s48
      %p60 = scmp.eq.s32.totalorder %s17, 1
      %p61 = por %p59, %p60
      %p63 = scmp.ne.s32.totalorder %s48, %s62
      %p64 = scmp.eq.s32.totalorder %s17, 0
      %p65 = por %p63, %p64
      %s66 = ssub.s32 %s11, %s18
      %p67 = scmp.eq.s32.totalorder %s66, 0
      %s69 = sadd.s32 %s68, 1
      %s70 = scalar_select %p67, %s68, %s69
      %p73 = pneg %p67
      %p74 = scmp.eq.s32.totalorder %s11, 1
      %p75 = por %p73, %p74
      %p76 = scmp.ne.s32.totalorder %s68, %s71
      %p77 = scmp.eq.s32.totalorder %s11, 0
      %p78 = por %p76, %p77
      %p79 = scmp.ne.s32.totalorder %s68, %s71
      %p80 = scmp.eq.s32.totalorder %s16, 1
      %p81 = por %p79, %p80
      %p82 = scmp.ne.s32.totalorder %s71, %s72
      %p83 = scmp.eq.s32.totalorder %s16, 0
      %p84 = por %p82, %p83
      %p85 = scmp.ne.s32.totalorder %s71, %s72
      %p86 = scmp.eq.s32.totalorder %s17, 1
      %p87 = por %p85, %p86
      %p89 = scmp.ne.s32.totalorder %s72, %s88
      %p90 = scmp.eq.s32.totalorder %s17, 0
      %p91 = por %p89, %p90
      %p92 = scmp.le.s32.totalorder 1, %s11
      %p93 = scmp.lt.s32.totalorder %s11, 3
      %p94 = pnand %p92, %p93
      %p95 = pneg %p94
      // Predicated region
      $region9: #{tpu_custom_call.1} parent=5 // pred_check
        _
      $region10: #{tpu_custom_call.1} parent=5 // pred_check_branch
        %97 = sbr.rel (%p94) target = $region12
      $region11: #{tpu_custom_call.1} parent=5 // pred_region
        %s98 = ssub.s32 %s11, 1
        // Predicated region
        $region13: #{tpu_custom_call.1} parent=11 // pred_check
          %p99 = pneg %p58
        $region14: #{tpu_custom_call.1} parent=11 // pred_check_branch
          %101 = sbr.rel (%p99) target = $region16
        $region15: #{tpu_custom_call.1} parent=11 // pred_region
          _
        $region16: #{tpu_custom_call.1} parent=11 // pred_fallthru
          _
      $region12: #{tpu_custom_call.1} parent=5 // pred_fallthru
        _
      %p102 = scmp.lt.s32.totalorder %s11, 2
      // Predicated region
      $region17: #{tpu_custom_call.1} parent=5 // pred_check
        %p103 = pneg %p102
      $region18: #{tpu_custom_call.1} parent=5 // pred_check_branch
        %105 = sbr.rel (%p103) target = $region20
      $region19: #{tpu_custom_call.1} parent=5 // pred_region
        // Predicated region
        $region21: #{tpu_custom_call.1} parent=19 // pred_check
          %p106 = pneg %p31
        $region22: #{tpu_custom_call.1} parent=19 // pred_check_branch
          %108 = sbr.rel (%p106) target = $region24
        $region23: #{tpu_custom_call.1} parent=19 // pred_region
          %s109 = smul.u32 16, %s11
          %p110 = scmp.lt.s32.totalorder %s109, 31
          %s111 = scalar_select %p110, %s109, 31
          %s112 = smul.addr %s111, 8
          %s113 = scalar_lea.vmem %s0, %s112
          %s114 = smul.u32 16, %s11
        $region24: #{tpu_custom_call.1} parent=19 // pred_fallthru
          _
      $region20: #{tpu_custom_call.1} parent=5 // pred_fallthru
        _
      %p115 = scmp.le.s32.totalorder 1, %s11
      %p116 = scmp.lt.s32.totalorder %s11, 3
      %p117 = pnand %p115, %p116
      %p118 = pneg %p117
      // Predicated region
      $region25: #{tpu_custom_call.1} parent=5 // pred_check
        _
      $region26: #{tpu_custom_call.1} parent=5 // pred_check_branch
        %120 = sbr.rel (%p117) target = $region28
      $region27: #{tpu_custom_call.1} parent=5 // pred_region
        %s121 = ssub.s32 %s11, 1
        %s122 = smul.u32 16, %s16
        %p123 = scmp.lt.s32.totalorder %s122, 31
        %s124 = scalar_select %p123, %s122, 31
        %s125 = smul.addr %s124, 8
        %s126 = scalar_lea.vmem %s0, %s125
        %p127 = pneg %p37
        %p128 = pneg %p34
        %p129 = pneg %p58
        %p130 = pneg %p55
        %p131 = pneg %p84
        %p132 = pneg %p81
        %s133 = sand.u32 %s71, 1
        %s134 = scalar_lea.sflag [#allocation3], %s133
        %s135 = sand.u32 %s71, 1
        %s136 = smul.addr %s135, 128
        %s137 = scalar_lea.vmem [#allocation2], %s136
        %s138 = smul.u32 16, %s16
        %p139 = scmp.lt.s32.totalorder %s138, 31
        %s140 = scalar_select %p139, %s138, 31
        %s141 = smul.addr %s140, 8
        %s142 = scalar_lea.vmem %s0, %s141
        %s143 = smul.u32 16, %s16
        %s144 = smul.u32 16, %s16
        %v145 = vld [vmem:[%s142] sm:$0xff]
        %v146 = vld [vmem:[%s142 + $0x8] sm:$0xff]
        %v147 = vld [vmem:[%s142 + $0x10] sm:$0xff]
        %v148 = vld [vmem:[%s142 + $0x18] sm:$0xff]
        %v149 = vld [vmem:[%s142 + $0x20] sm:$0xff]
        %v150 = vld [vmem:[%s142 + $0x28] sm:$0xff]
        %v151 = vld [vmem:[%s142 + $0x30] sm:$0xff]
        %v152 = vld [vmem:[%s142 + $0x38] sm:$0xff]
        %v153 = vld [vmem:[%s142 + $0x40] sm:$0xff]
        %v154 = vld [vmem:[%s142 + $0x48] sm:$0xff]
        %v155 = vld [vmem:[%s142 + $0x50] sm:$0xff]
        %v156 = vld [vmem:[%s142 + $0x58] sm:$0xff]
        %v157 = vld [vmem:[%s142 + $0x60] sm:$0xff]
        %v158 = vld [vmem:[%s142 + $0x68] sm:$0xff]
        %v159 = vld [vmem:[%s142 + $0x70] sm:$0xff]
        %v160 = vld [vmem:[%s142 + $0x78] sm:$0xff]
        %v161 = vld [vmem:[%s1] sm:$0xff]
        %v162 = vld [vmem:[%s1 + $0x8] sm:$0xff]
        %v163 = vld [vmem:[%s1 + $0x10] sm:$0xff]
        %v164 = vld [vmem:[%s1 + $0x18] sm:$0xff]
        %v165 = vld [vmem:[%s1 + $0x20] sm:$0xff]
        %v166 = vld [vmem:[%s1 + $0x28] sm:$0xff]
        %v167 = vld [vmem:[%s1 + $0x30] sm:$0xff]
        %v168 = vld [vmem:[%s1 + $0x38] sm:$0xff]
        %v169 = vld [vmem:[%s1 + $0x40] sm:$0xff]
        %v170 = vld [vmem:[%s1 + $0x48] sm:$0xff]
        %v171 = vld [vmem:[%s1 + $0x50] sm:$0xff]
        %v172 = vld [vmem:[%s1 + $0x58] sm:$0xff]
        %v173 = vld [vmem:[%s1 + $0x60] sm:$0xff]
        %v174 = vld [vmem:[%s1 + $0x68] sm:$0xff]
        %v175 = vld [vmem:[%s1 + $0x70] sm:$0xff]
        %v176 = vld [vmem:[%s1 + $0x78] sm:$0xff]
        %v177 = vld [vmem:[%s1 + $0x80] sm:$0xff]
        %v178 = vld [vmem:[%s1 + $0x88] sm:$0xff]
        %vm179 = vcmask 130048
        %v181 = vsel %vm179, %v145, 0
        %v184 = vsel %vm179, %v146, 0
        %v187 = vsel %vm179, %v147, 0
        %v190 = vsel %vm179, %v148, 0
        %v193 = vsel %vm179, %v149, 0
        %v196 = vsel %vm179, %v150, 0
        %v199 = vsel %vm179, %v151, 0
        %v202 = vsel %vm179, %v152, 0
        %v205 = vsel %vm179, %v153, 0
        %v208 = vsel %vm179, %v154, 0
        %v211 = vsel %vm179, %v155, 0
        %v214 = vsel %vm179, %v156, 0
        %v217 = vsel %vm179, %v157, 0
        %v220 = vsel %vm179, %v158, 0
        %v223 = vsel %vm179, %v159, 0
        %v226 = vsel %vm179, %v160, 0
        %228 = vmatprep.subr.mxu0 0.0
        %229 = vmatpush1.msra.mxu0 0.0
        %230 = vmatprep.subr.mxu0 0.0
        %231 = vmatpush1.msra.mxu0 0.0
        %232 = vmatprep.subr.mxu0 0.0
        %233 = vmatpush1.msra.mxu0 0.0
        %234 = vmatprep.subr.mxu0 0.0
        %235 = vmatpush1.msra.mxu0 0.0
        %236 = vmatprep.subr.mxu0 0.0
        %237 = vmatpush1.msra.mxu0 0.0
        %238 = vmatprep.subr.mxu0 0.0
        %239 = vmatpush1.msra.mxu0 0.0
        %240 = vmatprep.subr.mxu0 0.0
        %241 = vmatpush1.msra.mxu0 0.0
        %242 = vmatprep.subr.mxu0 0.0
        %243 = vmatpush1.msra.mxu0 0.0
        %244 = vmatprep.subr.mxu0 0.0
        %245 = vmatpush1.msra.mxu0 0.0
        %246 = vmatprep.subr.mxu0 0.0
        %247 = vmatpush1.msra.mxu0 0.0
        %248 = vmatprep.subr.mxu0 0.0
        %249 = vmatpush1.msra.mxu0 0.0
        %250 = vmatprep.subr.mxu0 0.0
        %251 = vmatpush1.msra.mxu0 0.0
        %252 = vmatprep.subr.mxu0 0.0
        %253 = vmatpush1.msra.mxu0 0.0
        %254 = vmatprep.subr.mxu0 0.0
        %255 = vmatpush1.msra.mxu0 0.0
        %256 = vmatprep.subr.mxu0 0.0
        %257 = vmatpush1.msra.mxu0 %v162
        %258 = vmatprep.subr.mxu0 0.0
        %259 = vmatpush1.msra.mxu0 %v161
        %260 = vmatprep.subr.mxu0 0.0
        %261 = vmatpush2.msra.mxu0 0.0
        %262 = vmatprep.subr.mxu0 0.0
        %263 = vmatpush2.msra.mxu0 0.0
        %264 = vmatprep.subr.mxu0 0.0
        %265 = vmatpush2.msra.mxu0 0.0
        %266 = vmatprep.subr.mxu0 0.0
        %267 = vmatpush2.msra.mxu0 0.0
        %268 = vmatprep.subr.mxu0 0.0
        %269 = vmatpush2.msra.mxu0 0.0
        %270 = vmatprep.subr.mxu0 0.0
        %271 = vmatpush2.msra.mxu0 0.0
        %272 = vmatprep.subr.mxu0 0.0
        %273 = vmatpush2.msra.mxu0 0.0
        %274 = vmatprep.subr.mxu0 0.0
        %275 = vmatpush2.msra.mxu0 0.0
        %276 = vmatprep.subr.mxu0 0.0
        %277 = vmatpush2.msra.mxu0 0.0
        %278 = vmatprep.subr.mxu0 0.0
        %279 = vmatpush2.msra.mxu0 0.0
        %280 = vmatprep.subr.mxu0 0.0
        %281 = vmatpush2.msra.mxu0 0.0
        %282 = vmatprep.subr.mxu0 0.0
        %283 = vmatpush2.msra.mxu0 0.0
        %284 = vmatprep.subr.mxu0 0.0
        %285 = vmatpush2.msra.mxu0 0.0
        %286 = vmatprep.subr.mxu0 0.0
        %287 = vmatpush2.msra.mxu0 0.0
        %288 = vmatprep.subr.mxu0 0.0
        %289 = vmatpush2.msra.mxu0 0.0
        %290 = vmatprep.subr.mxu0 0.0
        %291 = vmatpush2.msra.mxu0 0.0
        %292 = vmatprep.mubr.f32.mxu0 0.0
        %293 = vmatmul.mubr.f32.gmra.mxu0 %v181
        %v294 = vpop.f32.mrf.mxu0
        %v295 = vadd.f32 0.0, %v294
        %v296 = vpop.f32.mrf.mxu0
        %297 = vmatprep.mubr.f32.mxu0 0.0
        %298 = vmatmul.mubr.f32.gmra.mxu0 %v184
        %v299 = vpop.f32.mrf.mxu0
        %v300 = vadd.f32 0.0, %v299
        %v301 = vpop.f32.mrf.mxu0
        %302 = vmatprep.mubr.f32.mxu0 0.0
        %303 = vmatmul.mubr.f32.gmra.mxu0 %v187
        %v304 = vpop.f32.mrf.mxu0
        %v305 = vadd.f32 0.0, %v304
        %v306 = vpop.f32.mrf.mxu0
        %307 = vmatprep.mubr.f32.mxu0 0.0
        %308 = vmatmul.mubr.f32.gmra.mxu0 %v190
        %v309 = vpop.f32.mrf.mxu0
        %v310 = vadd.f32 0.0, %v309
        %v311 = vpop.f32.mrf.mxu0
        %312 = vmatprep.mubr.f32.mxu0 0.0
        %313 = vmatmul.mubr.f32.gmra.mxu0 %v193
        %v314 = vpop.f32.mrf.mxu0
        %v315 = vadd.f32 0.0, %v314
        %v316 = vpop.f32.mrf.mxu0
        %317 = vmatprep.mubr.f32.mxu0 0.0
        %318 = vmatmul.mubr.f32.gmra.mxu0 %v196
        %v319 = vpop.f32.mrf.mxu0
        %v320 = vadd.f32 0.0, %v319
        %v321 = vpop.f32.mrf.mxu0
        %322 = vmatprep.mubr.f32.mxu0 0.0
        %323 = vmatmul.mubr.f32.gmra.mxu0 %v199
        %v324 = vpop.f32.mrf.mxu0
        %v325 = vadd.f32 0.0, %v324
        %v326 = vpop.f32.mrf.mxu0
        %327 = vmatprep.mubr.f32.mxu0 0.0
        %328 = vmatmul.mubr.f32.gmra.mxu0 %v202
        %v329 = vpop.f32.mrf.mxu0
        %v330 = vadd.f32 0.0, %v329
        %v331 = vpop.f32.mrf.mxu0
        %332 = vmatprep.mubr.f32.mxu0 0.0
        %333 = vmatmul.mubr.f32.gmra.mxu0 %v205
        %v334 = vpop.f32.mrf.mxu0
        %v335 = vadd.f32 0.0, %v334
        %v336 = vpop.f32.mrf.mxu0
        %337 = vmatprep.mubr.f32.mxu0 0.0
        %338 = vmatmul.mubr.f32.gmra.mxu0 %v208
        %v339 = vpop.f32.mrf.mxu0
        %v340 = vadd.f32 0.0, %v339
        %v341 = vpop.f32.mrf.mxu0
        %342 = vmatprep.mubr.f32.mxu0 0.0
        %343 = vmatmul.mubr.f32.gmra.mxu0 %v211
        %v344 = vpop.f32.mrf.mxu0
        %v345 = vadd.f32 0.0, %v344
        %v346 = vpop.f32.mrf.mxu0
        %347 = vmatprep.mubr.f32.mxu0 0.0
        %348 = vmatmul.mubr.f32.gmra.mxu0 %v214
        %v349 = vpop.f32.mrf.mxu0
        %v350 = vadd.f32 0.0, %v349
        %v351 = vpop.f32.mrf.mxu0
        %352 = vmatprep.mubr.f32.mxu0 0.0
        %353 = vmatmul.mubr.f32.gmra.mxu0 %v217
        %v354 = vpop.f32.mrf.mxu0
        %v355 = vadd.f32 0.0, %v354
        %v356 = vpop.f32.mrf.mxu0
        %357 = vmatprep.mubr.f32.mxu0 0.0
        %358 = vmatmul.mubr.f32.gmra.mxu0 %v220
        %v359 = vpop.f32.mrf.mxu0
        %v360 = vadd.f32 0.0, %v359
        %v361 = vpop.f32.mrf.mxu0
        %362 = vmatprep.mubr.f32.mxu0 0.0
        %363 = vmatmul.mubr.f32.gmra.mxu0 %v223
        %v364 = vpop.f32.mrf.mxu0
        %v365 = vadd.f32 0.0, %v364
        %v366 = vpop.f32.mrf.mxu0
        %367 = vmatprep.mubr.f32.mxu0 0.0
        %368 = vmatmul.mubr.f32.gmra.mxu0 %v226
        %v369 = vpop.f32.mrf.mxu0
        %v370 = vadd.f32 0.0, %v369
        %v371 = vpop.f32.mrf.mxu0
        %372 = vdwg.mxu0
        %v373 = vmul.f32 %v295, 1.442695
        %v374 = vpow.pop %v373
        %v375 = vmul.f32 %v300, 1.442695
        %v376 = vpow.pop %v375
        %v377 = vmul.f32 %v305, 1.442695
        %v378 = vpow.pop %v377
        %v379 = vmul.f32 %v310, 1.442695
        %v380 = vpow.pop %v379
        %v381 = vmul.f32 %v315, 1.442695
        %v382 = vpow.pop %v381
        %v383 = vmul.f32 %v320, 1.442695
        %v384 = vpow.pop %v383
        %v385 = vmul.f32 %v325, 1.442695
        %v386 = vpow.pop %v385
        %v387 = vmul.f32 %v330, 1.442695
        %v388 = vpow.pop %v387
        %v389 = vmul.f32 %v335, 1.442695
        %v390 = vpow.pop %v389
        %v391 = vmul.f32 %v340, 1.442695
        %v392 = vpow.pop %v391
        %v393 = vmul.f32 %v345, 1.442695
        %v394 = vpow.pop %v393
        %v395 = vmul.f32 %v350, 1.442695
        %v396 = vpow.pop %v395
        %v397 = vmul.f32 %v355, 1.442695
        %v398 = vpow.pop %v397
        %v399 = vmul.f32 %v360, 1.442695
        %v400 = vpow.pop %v399
        %v401 = vmul.f32 %v365, 1.442695
        %v402 = vpow.pop %v401
        %v403 = vmul.f32 %v370, 1.442695
        %v404 = vpow.pop %v403
        %405 = vmatprep.subr.mxu0 0.0
        %406 = vmatpush1.msra.mxu0 %v178
        %407 = vmatprep.subr.mxu0 0.0
        %408 = vmatpush1.msra.mxu0 %v177
        %409 = vmatprep.subr.mxu0 0.0
        %410 = vmatpush1.msra.mxu0 %v176
        %411 = vmatprep.subr.mxu0 0.0
        %412 = vmatpush1.msra.mxu0 %v175
        %413 = vmatprep.subr.mxu0 0.0
        %414 = vmatpush1.msra.mxu0 %v174
        %415 = vmatprep.subr.mxu0 0.0
        %416 = vmatpush1.msra.mxu0 %v173
        %417 = vmatprep.subr.mxu0 0.0
        %418 = vmatpush1.msra.mxu0 %v172
        %419 = vmatprep.subr.mxu0 0.0
        %420 = vmatpush1.msra.mxu0 %v171
        %421 = vmatprep.subr.mxu0 0.0
        %422 = vmatpush1.msra.mxu0 %v170
        %423 = vmatprep.subr.mxu0 0.0
        %424 = vmatpush1.msra.mxu0 %v169
        %425 = vmatprep.subr.mxu0 0.0
        %426 = vmatpush1.msra.mxu0 %v168
        %427 = vmatprep.subr.mxu0 0.0
        %428 = vmatpush1.msra.mxu0 %v167
        %429 = vmatprep.subr.mxu0 0.0
        %430 = vmatpush1.msra.mxu0 %v166
        %431 = vmatprep.subr.mxu0 0.0
        %432 = vmatpush1.msra.mxu0 %v165
        %433 = vmatprep.subr.mxu0 0.0
        %434 = vmatpush1.msra.mxu0 %v164
        %435 = vmatprep.subr.mxu0 0.0
        %436 = vmatpush1.msra.mxu0 %v163
        %437 = vmatprep.subr.mxu0 0.0
        %438 = vmatpush2.msra.mxu0 0.0
        %439 = vmatprep.subr.mxu0 0.0
        %440 = vmatpush2.msra.mxu0 0.0
        %441 = vmatprep.subr.mxu0 0.0
        %442 = vmatpush2.msra.mxu0 0.0
        %443 = vmatprep.subr.mxu0 0.0
        %444 = vmatpush2.msra.mxu0 0.0
        %445 = vmatprep.subr.mxu0 0.0
        %446 = vmatpush2.msra.mxu0 0.0
        %447 = vmatprep.subr.mxu0 0.0
        %448 = vmatpush2.msra.mxu0 0.0
        %449 = vmatprep.subr.mxu0 0.0
        %450 = vmatpush2.msra.mxu0 0.0
        %451 = vmatprep.subr.mxu0 0.0
        %452 = vmatpush2.msra.mxu0 0.0
        %453 = vmatprep.subr.mxu0 0.0
        %454 = vmatpush2.msra.mxu0 0.0
        %455 = vmatprep.subr.mxu0 0.0
        %456 = vmatpush2.msra.mxu0 0.0
        %457 = vmatprep.subr.mxu0 0.0
        %458 = vmatpush2.msra.mxu0 0.0
        %459 = vmatprep.subr.mxu0 0.0
        %460 = vmatpush2.msra.mxu0 0.0
        %461 = vmatprep.subr.mxu0 0.0
        %462 = vmatpush2.msra.mxu0 0.0
        %463 = vmatprep.subr.mxu0 0.0
        %464 = vmatpush2.msra.mxu0 0.0
        %465 = vmatprep.subr.mxu0 0.0
        %466 = vmatpush2.msra.mxu0 0.0
        %467 = vmatprep.subr.mxu0 0.0
        %468 = vmatpush2.msra.mxu0 0.0
        %469 = vmatprep.mubr.f32.mxu0 0.0
        %470 = vmatmul.mubr.f32.gmra.mxu0 %v374
        %v471 = vpop.f32.mrf.mxu0
        %v472 = vadd.f32 0.0, %v471
        %v473 = vpop.f32.mrf.mxu0
        %474 = vmatprep.mubr.f32.mxu0 0.0
        %475 = vmatmul.mubr.f32.gmra.mxu0 %v376
        %v476 = vpop.f32.mrf.mxu0
        %v477 = vadd.f32 0.0, %v476
        %v478 = vpop.f32.mrf.mxu0
        %479 = vmatprep.mubr.f32.mxu0 0.0
        %480 = vmatmul.mubr.f32.gmra.mxu0 %v378
        %v481 = vpop.f32.mrf.mxu0
        %v482 = vadd.f32 0.0, %v481
        %v483 = vpop.f32.mrf.mxu0
        %484 = vmatprep.mubr.f32.mxu0 0.0
        %485 = vmatmul.mubr.f32.gmra.mxu0 %v380
        %v486 = vpop.f32.mrf.mxu0
        %v487 = vadd.f32 0.0, %v486
        %v488 = vpop.f32.mrf.mxu0
        %489 = vmatprep.mubr.f32.mxu0 0.0
        %490 = vmatmul.mubr.f32.gmra.mxu0 %v382
        %v491 = vpop.f32.mrf.mxu0
        %v492 = vadd.f32 0.0, %v491
        %v493 = vpop.f32.mrf.mxu0
        %494 = vmatprep.mubr.f32.mxu0 0.0
        %495 = vmatmul.mubr.f32.gmra.mxu0 %v384
        %v496 = vpop.f32.mrf.mxu0
        %v497 = vadd.f32 0.0, %v496
        %v498 = vpop.f32.mrf.mxu0
        %499 = vmatprep.mubr.f32.mxu0 0.0
        %500 = vmatmul.mubr.f32.gmra.mxu0 %v386
        %v501 = vpop.f32.mrf.mxu0
        %v502 = vadd.f32 0.0, %v501
        %v503 = vpop.f32.mrf.mxu0
        %504 = vmatprep.mubr.f32.mxu0 0.0
        %505 = vmatmul.mubr.f32.gmra.mxu0 %v388
        %v506 = vpop.f32.mrf.mxu0
        %v507 = vadd.f32 0.0, %v506
        %v508 = vpop.f32.mrf.mxu0
        %509 = vmatprep.mubr.f32.mxu0 0.0
        %510 = vmatmul.mubr.f32.gmra.mxu0 %v390
        %v511 = vpop.f32.mrf.mxu0
        %v512 = vadd.f32 0.0, %v511
        %v513 = vpop.f32.mrf.mxu0
        %514 = vmatprep.mubr.f32.mxu0 0.0
        %515 = vmatmul.mubr.f32.gmra.mxu0 %v392
        %v516 = vpop.f32.mrf.mxu0
        %v517 = vadd.f32 0.0, %v516
        %v518 = vpop.f32.mrf.mxu0
        %519 = vmatprep.mubr.f32.mxu0 0.0
        %520 = vmatmul.mubr.f32.gmra.mxu0 %v394
        %v521 = vpop.f32.mrf.mxu0
        %v522 = vadd.f32 0.0, %v521
        %v523 = vpop.f32.mrf.mxu0
        %524 = vmatprep.mubr.f32.mxu0 0.0
        %525 = vmatmul.mubr.f32.gmra.mxu0 %v396
        %v526 = vpop.f32.mrf.mxu0
        %v527 = vadd.f32 0.0, %v526
        %v528 = vpop.f32.mrf.mxu0
        %529 = vmatprep.mubr.f32.mxu0 0.0
        %530 = vmatmul.mubr.f32.gmra.mxu0 %v398
        %v531 = vpop.f32.mrf.mxu0
        %v532 = vadd.f32 0.0, %v531
        %v533 = vpop.f32.mrf.mxu0
        %534 = vmatprep.mubr.f32.mxu0 0.0
        %535 = vmatmul.mubr.f32.gmra.mxu0 %v400
        %v536 = vpop.f32.mrf.mxu0
        %v537 = vadd.f32 0.0, %v536
        %v538 = vpop.f32.mrf.mxu0
        %539 = vmatprep.mubr.f32.mxu0 0.0
        %540 = vmatmul.mubr.f32.gmra.mxu0 %v402
        %v541 = vpop.f32.mrf.mxu0
        %v542 = vadd.f32 0.0, %v541
        %v543 = vpop.f32.mrf.mxu0
        %544 = vmatprep.mubr.f32.mxu0 0.0
        %545 = vmatmul.mubr.f32.gmra.mxu0 %v404
        %v546 = vpop.f32.mrf.mxu0
        %v547 = vadd.f32 0.0, %v546
        %v548 = vpop.f32.mrf.mxu0
        %549 = vdwg.mxu0
        %550 = vst [vmem:[%s137] sm:$0xff] %v472
        %551 = vst [vmem:[%s137 + $0x8] sm:$0xff] %v477
        %552 = vst [vmem:[%s137 + $0x10] sm:$0xff] %v482
        %553 = vst [vmem:[%s137 + $0x18] sm:$0xff] %v487
        %554 = vst [vmem:[%s137 + $0x20] sm:$0xff] %v492
        %555 = vst [vmem:[%s137 + $0x28] sm:$0xff] %v497
        %556 = vst [vmem:[%s137 + $0x30] sm:$0xff] %v502
        %557 = vst [vmem:[%s137 + $0x38] sm:$0xff] %v507
        %558 = vst [vmem:[%s137 + $0x40] sm:$0xff] %v512
        %559 = vst [vmem:[%s137 + $0x48] sm:$0xff] %v517
        %560 = vst [vmem:[%s137 + $0x50] sm:$0xff] %v522
        %561 = vst [vmem:[%s137 + $0x58] sm:$0xff] %v527
        %562 = vst [vmem:[%s137 + $0x60] sm:$0xff] %v532
        %563 = vst [vmem:[%s137 + $0x68] sm:$0xff] %v537
        %564 = vst [vmem:[%s137 + $0x70] sm:$0xff] %v542
        %565 = vst [vmem:[%s137 + $0x78] sm:$0xff] %v547
        %s566 = sand.u32 %s71, 1
        %s567 = scalar_lea.sflag [#allocation3], %s566
        %s568 = sand.u32 %s71, 1
        %s569 = smul.addr %s568, 128
        %s570 = scalar_lea.vmem [#allocation2], %s569
        // Predicated region
        $region29: #{tpu_custom_call.1} parent=27 // pred_check
          %p571 = pneg %p81
        $region30: #{tpu_custom_call.1} parent=27 // pred_check_branch
          %573 = sbr.rel (%p571) target = $region32
        $region31: #{tpu_custom_call.1} parent=27 // pred_region
          %s574 = smul.u32 16, %s16
          %s576 = ssub.s32 2048, 2048
          %577 = vsyncadd %s567, %s576
          %s578 = smul.addr %s574, 128
          %s579 = scalar_lea.hbm %s2, %s578
          %s580 = sshll.u32 %s570, 4
          %s581 = int_to_ptr.vmem [resolvable:$true] %s580
          %586 = dma.vmem_to_hbm [thread:$0]  %s581, 2048, %s579, %s567, 128, 128, 8
        $region32: #{tpu_custom_call.1} parent=27 // pred_fallthru
          _
      $region28: #{tpu_custom_call.1} parent=5 // pred_fallthru
        _
      %p587 = scmp.le.s32.totalorder 2, %s11
      // Predicated region
      $region33: #{tpu_custom_call.1} parent=5 // pred_check
        %p588 = pneg %p587
      $region34: #{tpu_custom_call.1} parent=5 // pred_check_branch
        %590 = sbr.rel (%p588) target = $region36
      $region35: #{tpu_custom_call.1} parent=5 // pred_region
        %s591 = ssub.s32 %s11, 2
        // Predicated region
        $region37: #{tpu_custom_call.1} parent=35 // pred_check
          %p592 = pneg %p87
        $region38: #{tpu_custom_call.1} parent=35 // pred_check_branch
          %594 = sbr.rel (%p592) target = $region40
        $region39: #{tpu_custom_call.1} parent=35 // pred_region
          %s595 = sand.u32 %s72, 1
          %s596 = scalar_lea.sflag [#allocation3], %s595
          %s597 = sand.u32 %s72, 1
          %s598 = smul.addr %s597, 128
          %s599 = scalar_lea.vmem [#allocation2], %s598
          %600 = dma.done %s596, 2048
        $region40: #{tpu_custom_call.1} parent=35 // pred_fallthru
          _
      $region36: #{tpu_custom_call.1} parent=5 // pred_fallthru
        _
    $region6: #{tpu_custom_call.1} parent=1 // loop_footer
      %s15 = sadd.s32 1, %s11
    $region7: #{tpu_custom_call.1} parent=1 // loop_footer_branch
      %10 = sbr.rel target = $region3
    $region8: #{tpu_custom_call.1} parent=1 // loop_exit
      _
    %601 = vsyncpa [#allocation3], 1
    %s602 = scalar_lea.sflag [#allocation3], 1
    %603 = vsyncpa %s602, 1

</llo_original>
